<compile_context>
chip_gen: v7x
topology: tpu7x:2x2x1
jax: 0.10.0
libtpu: 0.0.40
codegen_flags: <defaults>
</compile_context>

<pallas_src>
import jax
import jax.numpy as jnp
from jax.experimental import pallas as pl
from jax.experimental.pallas import tpu as pltpu


def _attention_kernel(h_ref, ht_ref, mask_ref, w1h_ref, w1m_ref, b1_ref,
                      u_ref, out_ref):
    BB, T, H2 = h_ref.shape
    L = ht_ref.shape[1]

    h = h_ref[...]                                   # (BB, T, H2)
    mask = mask_ref[...]                             # (BB, T) int32

    # Query bias: mean over L first (matches reference order), then project.
    ht_mean = jnp.sum(ht_ref[...], axis=1) * (1.0 / L)             # (BB, H2)
    bias = jnp.dot(ht_mean, w1m_ref[...],
                   preferred_element_type=jnp.float32)             # (BB, A)
    bias = bias + b1_ref[...]                                      # (BB, A)
    A = bias.shape[-1]

    # Main projection: one (BB*T, H2) @ (H2, A) MXU matmul (no concat).
    proj = jnp.dot(h.reshape(BB * T, H2), w1h_ref[...],
                   preferred_element_type=jnp.float32)             # (BB*T, A)
    proj = jnp.tanh(proj.reshape(BB, T, A) + bias[:, None, :])     # (BB, T, A)

    # Scores: VPU multiply + lane reduction (instead of an N=1 MXU matmul).
    beta = jnp.sum(proj * u_ref[...], axis=-1)                     # (BB, T)
    beta = jnp.where(mask != 0, beta, -1e20)

    # Lane-major masked softmax over T.
    m = jnp.max(beta, axis=-1, keepdims=True)                      # (BB, 1)
    e = jnp.exp(beta - m)
    denom = jnp.sum(e, axis=-1, keepdims=True)
    # approx=True would move this onto the EUP; kept exact to hold 1e-4.
    alpha = e * pl.reciprocal(denom, approx=False)                 # (BB, T)

    # Weighted sum on the VPU + sublane reduce (MXU would be <1% occupied).
    out_ref[...] = jnp.sum(alpha[:, :, None] * h, axis=1)          # (BB, H2)


def _pick_block_b(B, T, L, H2, A, vmem_budget_bytes=24 << 20, max_bb=512):
    """Batch-block size that (a) divides B, (b) keeps the 2-D mask BlockSpec
    legal (multiple of 8, or the full batch), (c) fits the double-buffered
    padded working set in the VMEM budget, and (d) leaves >= 2 grid steps when
    possible so the 'parallel' batch axis can shard across TensorCores."""
    def ru(x, m):
        return ((x + m - 1) // m) * m

    # Padded per-batch VMEM footprint (f32), incl. double-buffered I/O blocks
    # and the in-kernel (T, A) projection intermediate.
    per_b = (2 * (ru(T, 8) * ru(H2, 128)        # h block
                  + ru(L, 8) * ru(H2, 128)      # ht block
                  + ru(T, 128)                  # mask row
                  + ru(H2, 128))                # output row
             + ru(T, 8) * ru(A, 128)            # proj intermediate
             ) * 4
    cap = max(8, (vmem_budget_bytes // max(per_b, 1)) // 8 * 8)
    cap = min(cap, max_bb, B)

    cands = [d for d in range(8, cap + 1, 8) if B % d == 0]
    if not cands:
        return B                                 # full-batch block, always legal
    multi_step = [d for d in cands if B // d >= 2]
    return max(multi_step) if multi_step else max(cands)


def attention_forward(h, h_mask, ht, w1, b1, u, block_b=None):
    """
    h      : (B, T, 2H) f32
    h_mask : (B, T)     int   (1 = valid, 0 = pad)
    ht     : (B, L, 2H) f32
    w1     : (A, 4H)    f32   (PyTorch Linear weight layout: out x in)
    b1     : (A,)       f32
    u      : (1, A)     f32
    returns: (B, 2H)    f32
    """
    B, T, H2 = h.shape
    L = ht.shape[1]
    A, H4 = w1.shape
    assert H4 == 2 * H2

    if block_b is None:
        block_b = _pick_block_b(B, T, L, H2, A)
    assert B % block_b == 0
    BB = block_b

    mask_i = h_mask.astype(jnp.int32)              # no f32 cast in the wrapper
    w1_t = w1.T                                    # (4H, A)
    w1_h = w1_t[:H2]                               # (2H, A)  acts on h
    w1_m = w1_t[H2:]                               # (2H, A)  acts on mean(ht)
    b1_2d = b1.reshape(1, A)
    u_2d = u.reshape(1, A)

    out = pl.pallas_call(
        _attention_kernel,
        out_shape=jax.ShapeDtypeStruct((B, H2), jnp.float32),
        grid_spec=pltpu.PrefetchScalarGridSpec(
            num_scalar_prefetch=0,
            grid=(B // BB,),
            in_specs=[
                pl.BlockSpec((BB, T, H2), lambda i: (i, 0, 0)),   # h
                pl.BlockSpec((BB, L, H2), lambda i: (i, 0, 0)),   # ht
                pl.BlockSpec((BB, T), lambda i: (i, 0)),          # mask
                pl.BlockSpec((H2, A), lambda i: (0, 0)),          # w1^T (h half)
                pl.BlockSpec((H2, A), lambda i: (0, 0)),          # w1^T (ht half)
                pl.BlockSpec((1, A), lambda i: (0, 0)),           # b1
                pl.BlockSpec((1, A), lambda i: (0, 0)),           # u
            ],
            out_specs=pl.BlockSpec((BB, H2), lambda i: (i, 0)),   # dense rows
        ),
        compiler_params=pltpu.CompilerParams(
            dimension_semantics=("parallel",),
            vmem_limit_bytes=32 * 1024 * 1024),
    )(h, ht, mask_i, w1_h, w1_m, b1_2d, u_2d)
    return out


def _reference(h, h_mask, ht, w1, b1, u):
    # Pure-JAX reference mirroring the PyTorch forward semantics.
    ht_mean = jnp.mean(ht, axis=1, keepdims=True)                     # (B,1,2H)
    ht_rep = jnp.broadcast_to(ht_mean, h.shape)                       # (B,T,2H)
    h_cat = jnp.concatenate([h, ht_rep], axis=2)                      # (B,T,4H)
    pad = (h_mask == 0)[..., None]                                    # True where masked
    h_cat = jnp.where(pad, 0.0, h_cat)
    proj = jnp.tanh(jnp.einsum('btf,af->bta', h_cat, w1) + b1)        # (B,T,A)
    proj = jnp.where(pad, 0.0, proj)
    beta = jnp.einsum('bta,oa->bto', proj, u)[..., 0]                 # (B,T)
    beta = jnp.where(h_mask == 0, -1e20, beta)
    alpha = jax.nn.softmax(beta, axis=1)[..., None]                   # (B,T,1)
    return jnp.sum(h * alpha, axis=1)                                 # (B,2H)


if __name__ == "__main__":
    # config: hidden_size=16 -> h feature dim 2*16=32, w1 input 4*16=64,
    #         attention_size=32
    hidden_size = 16
    attention_size = 32
    B, T, L = 8, 16, 4
    H2, H4, A = 2 * hidden_size, 4 * hidden_size, attention_size

    key = jax.random.PRNGKey(0)
    k_h, k_ht, k_w1, k_b1, k_u = jax.random.split(key, 5)

    h = jax.random.normal(k_h, (B, T, H2), dtype=jnp.float32)
    ht = jax.random.normal(k_ht, (B, L, H2), dtype=jnp.float32)

    # Variable-length sequences: positions >= length are padding.
    lengths = jnp.array([16, 12, 16, 8, 16, 10, 14, 5], dtype=jnp.int32)
    h_mask = (jnp.arange(T)[None, :] < lengths[:, None]).astype(jnp.int32)

    # Deterministic parameter init (xavier_uniform weights, PyTorch-style bias).
    def xavier_uniform(k, shape):
        fan_out, fan_in = shape
        bound = (6.0 / (fan_in + fan_out)) ** 0.5
        return jax.random.uniform(k, shape, jnp.float32, -bound, bound)

    w1 = xavier_uniform(k_w1, (A, H4))                       # (attention, 4*hidden)
    b1 = jax.random.uniform(k_b1, (A,), jnp.float32,
                            -1.0 / (H4 ** 0.5), 1.0 / (H4 ** 0.5))
    u = xavier_uniform(k_u, (1, A))                          # (1, attention)

    s = attention_forward(h, h_mask, ht, w1, b1, u)
    s = jax.block_until_ready(s)

    s_ref = _reference(h, h_mask, ht, w1, b1, u)
    assert s.shape == (B, H2)
    assert jnp.allclose(s, s_ref, atol=1e-4, rtol=1e-4), (s, s_ref)

    print("KERNEL_OK")
</pallas_src>

<mosaic_0001>
module attributes {stable_mosaic.version = 11 : i64} {
  func.func @_attention_kernel(%arg0: i32, %arg1: memref<8x16x32xf32, #tpu.memory_space<vmem>>, %arg2: memref<8x4x32xf32, #tpu.memory_space<vmem>>, %arg3: memref<8x16xi32, #tpu.memory_space<vmem>>, %arg4: memref<32x32xf32, #tpu.memory_space<vmem>>, %arg5: memref<32x32xf32, #tpu.memory_space<vmem>>, %arg6: memref<1x32xf32, #tpu.memory_space<vmem>>, %arg7: memref<1x32xf32, #tpu.memory_space<vmem>>, %arg8: memref<8x32xf32, #tpu.memory_space<vmem>>) attributes {dimension_semantics = [#tpu.dimension_semantics<parallel>], iteration_bounds = array<i64: 1>, scalar_prefetch = 0 : i64, scratch_operands = 0 : i64, tpu.core_type = #tpu.core_type<tc>, window_params = [{transform_indices = @transform_0, window_bounds = array<i64: 8, 16, 32>}, {transform_indices = @transform_1, window_bounds = array<i64: 8, 4, 32>}, {transform_indices = @transform_2, window_bounds = array<i64: 8, 16>}, {pipeline_mode = #tpu.pipeline_mode<synchronous>, transform_indices = @transform_3, window_bounds = array<i64: 32, 32>}, {pipeline_mode = #tpu.pipeline_mode<synchronous>, transform_indices = @transform_4, window_bounds = array<i64: 32, 32>}, {pipeline_mode = #tpu.pipeline_mode<synchronous>, transform_indices = @transform_5, window_bounds = array<i64: 1, 32>}, {pipeline_mode = #tpu.pipeline_mode<synchronous>, transform_indices = @transform_6, window_bounds = array<i64: 1, 32>}, {transform_indices = @transform_7, window_bounds = array<i64: 8, 32>}]} {
    %c0 = arith.constant 0 : index
    %c0_0 = arith.constant 0 : index
    %c0_1 = arith.constant 0 : index
    %0 = vector.load %arg1[%c0, %c0_0, %c0_1] : memref<8x16x32xf32, #tpu.memory_space<vmem>>, vector<8x16x32xf32>
    %c0_2 = arith.constant 0 : index
    %c0_3 = arith.constant 0 : index
    %1 = vector.load %arg3[%c0_2, %c0_3] : memref<8x16xi32, #tpu.memory_space<vmem>>, vector<8x16xi32>
    %c0_4 = arith.constant 0 : index
    %c0_5 = arith.constant 0 : index
    %c0_6 = arith.constant 0 : index
    %2 = vector.load %arg2[%c0_4, %c0_5, %c0_6] : memref<8x4x32xf32, #tpu.memory_space<vmem>>, vector<8x4x32xf32>
    %cst = arith.constant dense<0.000000e+00> : vector<8x32xf32>
    %3 = vector.multi_reduction <add>, %2, %cst [1] : vector<8x4x32xf32> to vector<8x32xf32>
    %cst_7 = arith.constant 2.500000e-01 : f32
    %4 = vector.broadcast %cst_7 : f32 to vector<8x32xf32>
    %5 = arith.mulf %3, %4 : vector<8x32xf32>
    %c0_8 = arith.constant 0 : index
    %c0_9 = arith.constant 0 : index
    %6 = vector.load %arg5[%c0_8, %c0_9] : memref<32x32xf32, #tpu.memory_space<vmem>>, vector<32x32xf32>
    %cst_10 = arith.constant dense<0.000000e+00> : vector<8x32xf32>
    %7 = tpu.matmul %5, %6, %cst_10 {dimension_numbers = #tpu.dot_dimension_numbers<[1], [0], [0], [1], [0, 0, 1, 1], [], []>} : vector<8x32xf32>, vector<32x32xf32>, vector<8x32xf32> -> vector<8x32xf32>
    %c0_11 = arith.constant 0 : index
    %c0_12 = arith.constant 0 : index
    %8 = vector.load %arg6[%c0_11, %c0_12] : memref<1x32xf32, #tpu.memory_space<vmem>>, vector<1x32xf32>
    %9 = vector.broadcast %8 : vector<1x32xf32> to vector<8x32xf32>
    %10 = arith.addf %7, %9 : vector<8x32xf32>
    %11 = vector.shape_cast %0 : vector<8x16x32xf32> to vector<128x32xf32>
    %c0_13 = arith.constant 0 : index
    %c0_14 = arith.constant 0 : index
    %12 = vector.load %arg4[%c0_13, %c0_14] : memref<32x32xf32, #tpu.memory_space<vmem>>, vector<32x32xf32>
    %cst_15 = arith.constant dense<0.000000e+00> : vector<128x32xf32>
    %13 = tpu.matmul %11, %12, %cst_15 {dimension_numbers = #tpu.dot_dimension_numbers<[1], [0], [0], [1], [0, 0, 1, 1], [], []>} : vector<128x32xf32>, vector<32x32xf32>, vector<128x32xf32> -> vector<128x32xf32>
    %14 = vector.shape_cast %13 : vector<128x32xf32> to vector<8x16x32xf32>
    %15 = vector.shape_cast %10 : vector<8x32xf32> to vector<8x1x32xf32>
    %16 = vector.broadcast %15 : vector<8x1x32xf32> to vector<8x16x32xf32>
    %17 = arith.addf %14, %16 : vector<8x16x32xf32>
    %18 = math.tanh %17 : vector<8x16x32xf32>
    %c0_16 = arith.constant 0 : index
    %c0_17 = arith.constant 0 : index
    %19 = vector.load %arg7[%c0_16, %c0_17] : memref<1x32xf32, #tpu.memory_space<vmem>>, vector<1x32xf32>
    %20 = vector.shape_cast %19 : vector<1x32xf32> to vector<1x1x32xf32>
    %21 = vector.broadcast %20 : vector<1x1x32xf32> to vector<8x16x32xf32>
    %22 = arith.mulf %18, %21 : vector<8x16x32xf32>
    %cst_18 = arith.constant dense<0.000000e+00> : vector<8x16xf32>
    %23 = vector.multi_reduction <add>, %22, %cst_18 [2] : vector<8x16x32xf32> to vector<8x16xf32>
    %c0_i32 = arith.constant 0 : i32
    %24 = vector.broadcast %c0_i32 : i32 to vector<8x16xi32>
    %25 = arith.cmpi ne, %1, %24 : vector<8x16xi32>
    %cst_19 = arith.constant -1.000000e+20 : f32
    %26 = vector.broadcast %cst_19 : f32 to vector<8x16xf32>
    %27 = arith.select %25, %23, %26 : vector<8x16xi1>, vector<8x16xf32>
    %cst_20 = arith.constant dense<0xFF800000> : vector<8xf32>
    %28 = vector.multi_reduction <maximumf>, %27, %cst_20 [1] : vector<8x16xf32> to vector<8xf32>
    %29 = vector.shape_cast %28 : vector<8xf32> to vector<8x1xf32>
    %30 = vector.broadcast %29 : vector<8x1xf32> to vector<8x16xf32>
    %31 = arith.subf %27, %30 : vector<8x16xf32>
    %32 = math.exp %31 : vector<8x16xf32>
    %cst_21 = arith.constant dense<0.000000e+00> : vector<8xf32>
    %33 = vector.multi_reduction <add>, %32, %cst_21 [1] : vector<8x16xf32> to vector<8xf32>
    %34 = vector.shape_cast %33 : vector<8xf32> to vector<8x1xf32>
    %35 = tpu.reciprocal %34 : vector<8x1xf32> -> vector<8x1xf32>
    %36 = vector.broadcast %35 : vector<8x1xf32> to vector<8x16xf32>
    %37 = arith.mulf %32, %36 : vector<8x16xf32>
    %38 = vector.shape_cast %37 : vector<8x16xf32> to vector<8x16x1xf32>
    %39 = vector.broadcast %38 : vector<8x16x1xf32> to vector<8x16x32xf32>
    %40 = arith.mulf %39, %0 : vector<8x16x32xf32>
    %cst_22 = arith.constant dense<0.000000e+00> : vector<8x32xf32>
    %41 = vector.multi_reduction <add>, %40, %cst_22 [1] : vector<8x16x32xf32> to vector<8x32xf32>
    %c0_23 = arith.constant 0 : index
    %c0_24 = arith.constant 0 : index
    %42 = vector.load %arg8[%c0_23, %c0_24] : memref<8x32xf32, #tpu.memory_space<vmem>>, vector<8x32xf32>
    tpu.vector_store %arg8[%c0_23, %c0_24], %41 {strides = array<i32>} : memref<8x32xf32, #tpu.memory_space<vmem>>, vector<8x32xf32>,
    return
  }
  func.func @transform_0(%arg0: i32) -> (i32, i32, i32) {
    %c0_i32 = arith.constant 0 : i32
    %c0_i32_0 = arith.constant 0 : i32
    %c0_i32_1 = arith.constant 0 : i32
    return %arg0, %c0_i32, %c0_i32_0 : i32, i32, i32
  }
  func.func @transform_1(%arg0: i32) -> (i32, i32, i32) {
    %c0_i32 = arith.constant 0 : i32
    %c0_i32_0 = arith.constant 0 : i32
    %c0_i32_1 = arith.constant 0 : i32
    return %arg0, %c0_i32, %c0_i32_0 : i32, i32, i32
  }
  func.func @transform_2(%arg0: i32) -> (i32, i32) {
    %c0_i32 = arith.constant 0 : i32
    %c0_i32_0 = arith.constant 0 : i32
    return %arg0, %c0_i32 : i32, i32
  }
  func.func @transform_3(%arg0: i32) -> (i32, i32) {
    %c0_i32 = arith.constant 0 : i32
    %c0_i32_0 = arith.constant 0 : i32
    %c0_i32_1 = arith.constant 0 : i32
    return %c0_i32, %c0_i32_0 : i32, i32
  }
  func.func @transform_4(%arg0: i32) -> (i32, i32) {
    %c0_i32 = arith.constant 0 : i32
    %c0_i32_0 = arith.constant 0 : i32
    %c0_i32_1 = arith.constant 0 : i32
    return %c0_i32, %c0_i32_0 : i32, i32
  }
  func.func @transform_5(%arg0: i32) -> (i32, i32) {
    %c0_i32 = arith.constant 0 : i32
    %c0_i32_0 = arith.constant 0 : i32
    %c0_i32_1 = arith.constant 0 : i32
    return %c0_i32, %c0_i32_0 : i32, i32
  }
  func.func @transform_6(%arg0: i32) -> (i32, i32) {
    %c0_i32 = arith.constant 0 : i32
    %c0_i32_0 = arith.constant 0 : i32
    %c0_i32_1 = arith.constant 0 : i32
    return %c0_i32, %c0_i32_0 : i32, i32
  }
  func.func @transform_7(%arg0: i32) -> (i32, i32) {
    %c0_i32 = arith.constant 0 : i32
    %c0_i32_0 = arith.constant 0 : i32
    return %arg0, %c0_i32 : i32, i32
  }
}

</mosaic_0001>

<llo_original>
// kernel: tpu_custom_call.1
$region0: #{tpu_custom_call.1}
  #allocation0 [shape = 'u32[]', space=smem, size = 0x4, offset = 0x4, fixed_abs, tag = 'smem constant byte address 0x4 - core index']
  #allocation1 [shape = 'u32[144,128]{1,0:T(1,128)}', space=vmem, size = 0x12000, scoped, tag = 'internal scratch']
  %s0 = inlined_call_operand.hbm [shape: f32[8,16,32], index: 0, kind: input, shape index: {}]
  %s1 = inlined_call_operand.hbm [shape: f32[8,4,32], index: 1, kind: input, shape index: {}]
  %s2 = inlined_call_operand.hbm [shape: s32[8,16], index: 2, kind: input, shape index: {}]
  %s3 = inlined_call_operand.hbm [shape: f32[32,32], index: 3, kind: input, shape index: {}]
  %s4 = inlined_call_operand.hbm [shape: f32[32,32], index: 4, kind: input, shape index: {}]
  %s5 = inlined_call_operand.vmem [shape: f32[1,32], index: 5, kind: input, shape index: {}]
  %s6 = inlined_call_operand.vmem [shape: f32[1,32], index: 6, kind: input, shape index: {}]
  %s7 = inlined_call_operand.hbm [shape: f32[8,32], index: 7, kind: output, shape index: {}]
  %s8 = sld [smem:[#allocation0]]
  $region58: #{tpu_custom_call.1} parent=0
    _
  %s10 = ssub.s32 1, %s8
  %s11 = scalar_select 0, %s10, %s8
  $region1: #{tpu_custom_call.1} parent=0
    #allocation2 [shape = 'u8[65536]{0}', space=vmem, size = 0x10000, scoped, tag = 'input window, operand 0, single buffered']
    #allocation3 [shape = 's32[1]{0}', space=sflag, size = 0x4, scoped, tag = 'scoped memory for tpu_custom_call.1']
    #allocation4 [shape = 's32[1]{0}', space=sflag, size = 0x4, scoped, tag = 'scoped memory for tpu_custom_call.1']
    #allocation5 [shape = 'u8[16384]{0}', space=vmem, size = 0x4000, scoped, tag = 'input window, operand 1, single buffered']
    #allocation6 [shape = 's32[1]{0}', space=sflag, size = 0x4, scoped, tag = 'scoped memory for tpu_custom_call.1']
    #allocation7 [shape = 'u8[4096]{0}', space=vmem, size = 0x1000, scoped, tag = 'input window, operand 2, single buffered']
    #allocation8 [shape = 'u8[16384]{0}', space=vmem, size = 0x4000, scoped, tag = 'input window, operand 3, single buffered']
    #allocation9 [shape = 's32[1]{0}', space=sflag, size = 0x4, scoped, tag = 'scoped memory for tpu_custom_call.1']
    #allocation10 [shape = 'u8[16384]{0}', space=vmem, size = 0x4000, scoped, tag = 'input window, operand 4, single buffered']
    #allocation11 [shape = 'u8[4096]{0}', space=vmem, size = 0x1000, scoped, tag = 'output window, operand 0, single buffered']
    %12 = vsyncpa [#allocation3], 0
    %13 = vsyncpa [#allocation6], 0
    %14 = vsyncpa [#allocation9], 0
    %15 = vsyncpa [#allocation4], 0
    // Predicated region
    $region2: #{tpu_custom_call.1} parent=1 // pred_check
      _
    $region3: #{tpu_custom_call.1} parent=1 // pred_check_branch
      %17 = sbr.rel (0) target = $region5
    $region4: #{tpu_custom_call.1} parent=1 // pred_region
      %s19 = ssub.s32 2048, 2048
      %20 = vsyncadd [#allocation3], %s19
      %s21 = sshll.u32 [#allocation2], 4
      %s22 = int_to_ptr.vmem [resolvable:$true] %s21
      %27 = dma.hbm_to_vmem [thread:$0]  %s0, 2048, %s22, [#allocation3], 128, 128, 8
    $region5: #{tpu_custom_call.1} parent=1 // pred_fallthru
      _
    // Predicated region
    $region6: #{tpu_custom_call.1} parent=1 // pred_check
      _
    $region7: #{tpu_custom_call.1} parent=1 // pred_check_branch
      %29 = sbr.rel (0) target = $region9
    $region8: #{tpu_custom_call.1} parent=1 // pred_region
      %s31 = ssub.s32 512, 512
      %32 = vsyncadd [#allocation6], %s31
      %s33 = sshll.u32 [#allocation5], 4
      %s34 = int_to_ptr.vmem [resolvable:$true] %s33
      %39 = dma.hbm_to_vmem [thread:$0]  %s1, 512, %s34, [#allocation6], 64, 64, 4
    $region9: #{tpu_custom_call.1} parent=1 // pred_fallthru
      _
    // Predicated region
    $region10: #{tpu_custom_call.1} parent=1 // pred_check
      _
    $region11: #{tpu_custom_call.1} parent=1 // pred_check_branch
      %41 = sbr.rel (0) target = $region13
    $region12: #{tpu_custom_call.1} parent=1 // pred_region
      %s43 = ssub.s32 128, 128
      %44 = vsyncadd [#allocation6], %s43
      %s46 = sshll.u32 [#allocation7], 4
      %s47 = int_to_ptr.vmem [resolvable:$true] %s46
      %49 = dma.hbm_to_vmem [thread:$0]  %s2, 128, %s47, [#allocation6]
    $region13: #{tpu_custom_call.1} parent=1 // pred_fallthru
      _
    // Predicated region
    $region14: #{tpu_custom_call.1} parent=1 // pred_check
      _
    $region15: #{tpu_custom_call.1} parent=1 // pred_check_branch
      %51 = sbr.rel (0) target = $region17
    $region16: #{tpu_custom_call.1} parent=1 // pred_region
      %s53 = ssub.s32 512, 512
      %54 = vsyncadd [#allocation9], %s53
      %s55 = sshll.u32 [#allocation8], 4
      %s56 = int_to_ptr.vmem [resolvable:$true] %s55
      %61 = dma.hbm_to_vmem [thread:$0]  %s3, 512, %s56, [#allocation9], 128, 128, 8
    $region17: #{tpu_custom_call.1} parent=1 // pred_fallthru
      _
    // Predicated region
    $region18: #{tpu_custom_call.1} parent=1 // pred_check
      _
    $region19: #{tpu_custom_call.1} parent=1 // pred_check_branch
      %63 = sbr.rel (0) target = $region21
    $region20: #{tpu_custom_call.1} parent=1 // pred_region
      %s65 = ssub.s32 512, 512
      %66 = vsyncadd [#allocation9], %s65
      %s67 = sshll.u32 [#allocation10], 4
      %s68 = int_to_ptr.vmem [resolvable:$true] %s67
      %73 = dma.hbm_to_vmem [thread:$0]  %s4, 512, %s68, [#allocation9], 128, 128, 8
    $region21: #{tpu_custom_call.1} parent=1 // pred_fallthru
      _
    // Predicated region
    $region22: #{tpu_custom_call.1} parent=1 // pred_check
      _
    $region23: #{tpu_custom_call.1} parent=1 // pred_check_branch
      %75 = sbr.rel (0) target = $region25
    $region24: #{tpu_custom_call.1} parent=1 // pred_region
      _
    $region25: #{tpu_custom_call.1} parent=1 // pred_fallthru
      _
    // Predicated region
    $region26: #{tpu_custom_call.1} parent=1 // pred_check
      _
    $region27: #{tpu_custom_call.1} parent=1 // pred_check_branch
      %77 = sbr.rel (0) target = $region29
    $region28: #{tpu_custom_call.1} parent=1 // pred_region
      _
    $region29: #{tpu_custom_call.1} parent=1 // pred_fallthru
      _
    // Predicated region
    $region30: #{tpu_custom_call.1} parent=1 // pred_check
      _
    $region31: #{tpu_custom_call.1} parent=1 // pred_check_branch
      %79 = sbr.rel (0) target = $region33
    $region32: #{tpu_custom_call.1} parent=1 // pred_region
      %80 = dma.done [#allocation3], 2048
    $region33: #{tpu_custom_call.1} parent=1 // pred_fallthru
      _
    // Predicated region
    $region34: #{tpu_custom_call.1} parent=1 // pred_check
      _
    $region35: #{tpu_custom_call.1} parent=1 // pred_check_branch
      %82 = sbr.rel (0) target = $region37
    $region36: #{tpu_custom_call.1} parent=1 // pred_region
      %83 = dma.done [#allocation6], 512
    $region37: #{tpu_custom_call.1} parent=1 // pred_fallthru
      _
    // Predicated region
    $region38: #{tpu_custom_call.1} parent=1 // pred_check
      _
    $region39: #{tpu_custom_call.1} parent=1 // pred_check_branch
      %85 = sbr.rel (0) target = $region41
    $region40: #{tpu_custom_call.1} parent=1 // pred_region
      %86 = dma.done [#allocation6], 128
    $region41: #{tpu_custom_call.1} parent=1 // pred_fallthru
      _
    // Predicated region
    $region42: #{tpu_custom_call.1} parent=1 // pred_check
      _
    $region43: #{tpu_custom_call.1} parent=1 // pred_check_branch
      %88 = sbr.rel (0) target = $region45
    $region44: #{tpu_custom_call.1} parent=1 // pred_region
      %89 = dma.done [#allocation9], 512
    $region45: #{tpu_custom_call.1} parent=1 // pred_fallthru
      _
    // Predicated region
    $region46: #{tpu_custom_call.1} parent=1 // pred_check
      _
    $region47: #{tpu_custom_call.1} parent=1 // pred_check_branch
      %91 = sbr.rel (0) target = $region49
    $region48: #{tpu_custom_call.1} parent=1 // pred_region
      %92 = dma.done [#allocation9], 512
    $region49: #{tpu_custom_call.1} parent=1 // pred_fallthru
      _
    %v93 = vld [vmem:[#allocation2] sm:$0xff]
    %v94 = vld [vmem:[#allocation2 + $0x8] sm:$0xff]
    %v95 = vld [vmem:[#allocation2 + $0x10] sm:$0xff]
    %v96 = vld [vmem:[#allocation2 + $0x18] sm:$0xff]
    %v97 = vld [vmem:[#allocation2 + $0x20] sm:$0xff]
    %v98 = vld [vmem:[#allocation2 + $0x28] sm:$0xff]
    %v99 = vld [vmem:[#allocation2 + $0x30] sm:$0xff]
    %v100 = vld [vmem:[#allocation2 + $0x38] sm:$0xff]
    %v101 = vld [vmem:[#allocation2 + $0x40] sm:$0xff]
    %v102 = vld [vmem:[#allocation2 + $0x48] sm:$0xff]
    %v103 = vld [vmem:[#allocation2 + $0x50] sm:$0xff]
    %v104 = vld [vmem:[#allocation2 + $0x58] sm:$0xff]
    %v105 = vld [vmem:[#allocation2 + $0x60] sm:$0xff]
    %v106 = vld [vmem:[#allocation2 + $0x68] sm:$0xff]
    %v107 = vld [vmem:[#allocation2 + $0x70] sm:$0xff]
    %v108 = vld [vmem:[#allocation2 + $0x78] sm:$0xff]
    %v109 = vld [vmem:[#allocation7] sm:$0xff]
    %v110 = vld [vmem:[#allocation5] sm:$0xf]
    %v111 = vld [vmem:[#allocation5 + $0x4] sm:$0xf]
    %v112 = vld [vmem:[#allocation5 + $0x8] sm:$0xf]
    %v113 = vld [vmem:[#allocation5 + $0xc] sm:$0xf]
    %v114 = vld [vmem:[#allocation5 + $0x10] sm:$0xf]
    %v115 = vld [vmem:[#allocation5 + $0x14] sm:$0xf]
    %v116 = vld [vmem:[#allocation5 + $0x18] sm:$0xf]
    %v117 = vld [vmem:[#allocation5 + $0x1c] sm:$0xf]
    %vm118 = vcmask 257024
    %v119 = vsel %vm118, %v110, 0.0
    %v120 = vrot.slane %v119, 4
    %v121 = vadd.f32 %v119, %v120
    %v122 = vrot.slane %v121, 2
    %v123 = vadd.f32 %v121, %v122
    %v124 = vrot.slane %v123, 1
    %v125 = vadd.f32 %v123, %v124
    %v126 = vsel %vm118, %v111, 0.0
    %v127 = vrot.slane %v126, 4
    %v128 = vadd.f32 %v126, %v127
    %v129 = vrot.slane %v128, 2
    %v130 = vadd.f32 %v128, %v129
    %v131 = vrot.slane %v130, 1
    %v132 = vadd.f32 %v130, %v131
    %v133 = vsel %vm118, %v112, 0.0
    %v134 = vrot.slane %v133, 4
    %v135 = vadd.f32 %v133, %v134
    %v136 = vrot.slane %v135, 2
    %v137 = vadd.f32 %v135, %v136
    %v138 = vrot.slane %v137, 1
    %v139 = vadd.f32 %v137, %v138
    %v140 = vsel %vm118, %v113, 0.0
    %v141 = vrot.slane %v140, 4
    %v142 = vadd.f32 %v140, %v141
    %v143 = vrot.slane %v142, 2
    %v144 = vadd.f32 %v142, %v143
    %v145 = vrot.slane %v144, 1
    %v146 = vadd.f32 %v144, %v145
    %v147 = vsel %vm118, %v114, 0.0
    %v148 = vrot.slane %v147, 4
    %v149 = vadd.f32 %v147, %v148
    %v150 = vrot.slane %v149, 2
    %v151 = vadd.f32 %v149, %v150
    %v152 = vrot.slane %v151, 1
    %v153 = vadd.f32 %v151, %v152
    %v154 = vsel %vm118, %v115, 0.0
    %v155 = vrot.slane %v154, 4
    %v156 = vadd.f32 %v154, %v155
    %v157 = vrot.slane %v156, 2
    %v158 = vadd.f32 %v156, %v157
    %v159 = vrot.slane %v158, 1
    %v160 = vadd.f32 %v158, %v159
    %v161 = vsel %vm118, %v116, 0.0
    %v162 = vrot.slane %v161, 4
    %v163 = vadd.f32 %v161, %v162
    %v164 = vrot.slane %v163, 2
    %v165 = vadd.f32 %v163, %v164
    %v166 = vrot.slane %v165, 1
    %v167 = vadd.f32 %v165, %v166
    %v168 = vsel %vm118, %v117, 0.0
    %v169 = vrot.slane %v168, 4
    %v170 = vadd.f32 %v168, %v169
    %v171 = vrot.slane %v170, 2
    %v172 = vadd.f32 %v170, %v171
    %v173 = vrot.slane %v172, 1
    %v174 = vadd.f32 %v172, %v173
    %v175 = vmul.f32 %v125, 0.25
    %v176 = vmul.f32 %v132, 0.25
    %v177 = vmul.f32 %v139, 0.25
    %v178 = vmul.f32 %v146, 0.25
    %v179 = vmul.f32 %v153, 0.25
    %v180 = vmul.f32 %v160, 0.25
    %v181 = vmul.f32 %v167, 0.25
    %v182 = vmul.f32 %v174, 0.25
    %v183 = vld [vmem:[#allocation10] sm:$0xff]
    %v184 = vld [vmem:[#allocation10 + $0x8] sm:$0xff]
    %v185 = vld [vmem:[#allocation10 + $0x10] sm:$0xff]
    %v186 = vld [vmem:[#allocation10 + $0x18] sm:$0xff]
    %v187 = vld [vmem:[%s5] sm:$0x1]
    %v189 = vlaneseq
    %v190 = vshrl.u32 %v189, 7
    %v191 = vsub.s32 0, %v190
    %v192 = vrot.slane %v187, %v191
    %vm202 = vcmask 1041409
    %v203 = vsel %vm202, %v176, %v175
    %vm204 = vcmask 1042434
    %v205 = vsel %vm204, %v177, %v203
    %vm206 = vcmask 1043459
    %v207 = vsel %vm206, %v178, %v205
    %vm208 = vcmask 1044484
    %v209 = vsel %vm208, %v179, %v207
    %vm210 = vcmask 1045509
    %v211 = vsel %vm210, %v180, %v209
    %vm212 = vcmask 1046534
    %v213 = vsel %vm212, %v181, %v211
    %vm214 = vcmask 1047559
    %v215 = vsel %vm214, %v182, %v213
    %vm216 = vcmask 261120
    %v217 = vsel %vm216, %v215, 0
    %219 = vmatprep.subr.mxu0 0.0
    %220 = vmatpush1.msra.mxu0 %v183
    %221 = vmatprep.subr.mxu0 0.0
    %222 = vmatpush1.msra.mxu0 %v184
    %223 = vmatprep.subr.mxu0 0.0
    %224 = vmatpush1.msra.mxu0 %v185
    %225 = vmatprep.subr.mxu0 0.0
    %226 = vmatpush1.msra.mxu0 %v186
    %227 = vmatprep.subr.mxu0 0.0
    %228 = vmatpush1.msra.mxu0 0.0
    %229 = vmatprep.subr.mxu0 0.0
    %230 = vmatpush1.msra.mxu0 0.0
    %231 = vmatprep.subr.mxu0 0.0
    %232 = vmatpush1.msra.mxu0 0.0
    %233 = vmatprep.subr.mxu0 0.0
    %234 = vmatpush1.msra.mxu0 0.0
    %235 = vmatprep.subr.mxu0 0.0
    %236 = vmatpush1.msra.mxu0 0.0
    %237 = vmatprep.subr.mxu0 0.0
    %238 = vmatpush1.msra.mxu0 0.0
    %239 = vmatprep.subr.mxu0 0.0
    %240 = vmatpush1.msra.mxu0 0.0
    %241 = vmatprep.subr.mxu0 0.0
    %242 = vmatpush1.msra.mxu0 0.0
    %243 = vmatprep.subr.mxu0 0.0
    %244 = vmatpush1.msra.mxu0 0.0
    %245 = vmatprep.subr.mxu0 0.0
    %246 = vmatpush1.msra.mxu0 0.0
    %247 = vmatprep.subr.mxu0 0.0
    %248 = vmatpush1.msra.mxu0 0.0
    %249 = vmatprep.subr.mxu0 0.0
    %250 = vmatpush1.msra.mxu0 0.0
    %251 = vmatprep.subr.mxu0 0.0
    %252 = vmatpush1.msra.mxu0 0.0
    %253 = vmatprep.subr.mxu0 0.0
    %254 = vmatpush1.msra.mxu0 0.0
    %255 = vmatprep.subr.mxu0 0.0
    %256 = vmatpush1.msra.mxu0 0.0
    %257 = vmatprep.subr.mxu0 0.0
    %258 = vmatpush1.msra.mxu0 0.0
    %259 = vmatprep.subr.mxu0 0.0
    %260 = vmatpush1.msra.mxu0 0.0
    %261 = vmatprep.subr.mxu0 0.0
    %262 = vmatpush1.msra.mxu0 0.0
    %263 = vmatprep.subr.mxu0 0.0
    %264 = vmatpush1.msra.mxu0 0.0
    %265 = vmatprep.subr.mxu0 0.0
    %266 = vmatpush1.msra.mxu0 0.0
    %267 = vmatprep.subr.mxu0 0.0
    %268 = vmatpush1.msra.mxu0 0.0
    %269 = vmatprep.subr.mxu0 0.0
    %270 = vmatpush1.msra.mxu0 0.0
    %271 = vmatprep.subr.mxu0 0.0
    %272 = vmatpush1.msra.mxu0 0.0
    %273 = vmatprep.subr.mxu0 0.0
    %274 = vmatpush1.msra.mxu0 0.0
    %275 = vmatprep.subr.mxu0 0.0
    %276 = vmatpush1.msra.mxu0 0.0
    %277 = vmatprep.subr.mxu0 0.0
    %278 = vmatpush1.msra.mxu0 0.0
    %279 = vmatprep.subr.mxu0 0.0
    %280 = vmatpush1.msra.mxu0 0.0
    %281 = vmatprep.subr.mxu0 0.0
    %282 = vmatpush1.msra.mxu0 0.0
    %283 = vmatprep.mubr.f32.mxu0 0.0
    %284 = vmatmul.mubr.f32.gmra.mrb[0].mxu0 %v217
    %v285 = vpop.f32.mrb[0].mxu0
    %v286 = vadd.f32 %v192, %v285
    %v287 = vpop.f32.mrb[0].mxu0
    %288 = vdwg.mxu0
    %v289 = vld [vmem:[#allocation8] sm:$0xff]
    %v290 = vld [vmem:[#allocation8 + $0x8] sm:$0xff]
    %v291 = vld [vmem:[#allocation8 + $0x10] sm:$0xff]
    %v292 = vld [vmem:[#allocation8 + $0x18] sm:$0xff]
    %v294 = vsel %vm216, %v93, 0
    %v297 = vsel %vm216, %v94, 0
    %v300 = vsel %vm216, %v95, 0
    %v303 = vsel %vm216, %v96, 0
    %v306 = vsel %vm216, %v97, 0
    %v309 = vsel %vm216, %v98, 0
    %v312 = vsel %vm216, %v99, 0
    %v315 = vsel %vm216, %v100, 0
    %v318 = vsel %vm216, %v101, 0
    %v321 = vsel %vm216, %v102, 0
    %v324 = vsel %vm216, %v103, 0
    %v327 = vsel %vm216, %v104, 0
    %v330 = vsel %vm216, %v105, 0
    %v333 = vsel %vm216, %v106, 0
    %v336 = vsel %vm216, %v107, 0
    %v339 = vsel %vm216, %v108, 0
    %341 = vmatprep.subr.mxu0 0.0
    %342 = vmatpush1.msra.mxu0 %v289
    %343 = vmatprep.subr.mxu0 0.0
    %344 = vmatpush1.msra.mxu0 %v290
    %345 = vmatprep.subr.mxu0 0.0
    %346 = vmatpush1.msra.mxu0 %v291
    %347 = vmatprep.subr.mxu0 0.0
    %348 = vmatpush1.msra.mxu0 %v292
    %349 = vmatprep.subr.mxu0 0.0
    %350 = vmatpush1.msra.mxu0 0.0
    %351 = vmatprep.subr.mxu0 0.0
    %352 = vmatpush1.msra.mxu0 0.0
    %353 = vmatprep.subr.mxu0 0.0
    %354 = vmatpush1.msra.mxu0 0.0
    %355 = vmatprep.subr.mxu0 0.0
    %356 = vmatpush1.msra.mxu0 0.0
    %357 = vmatprep.subr.mxu0 0.0
    %358 = vmatpush1.msra.mxu0 0.0
    %359 = vmatprep.subr.mxu0 0.0
    %360 = vmatpush1.msra.mxu0 0.0
    %361 = vmatprep.subr.mxu0 0.0
    %362 = vmatpush1.msra.mxu0 0.0
    %363 = vmatprep.subr.mxu0 0.0
    %364 = vmatpush1.msra.mxu0 0.0
    %365 = vmatprep.subr.mxu0 0.0
    %366 = vmatpush1.msra.mxu0 0.0
    %367 = vmatprep.subr.mxu0 0.0
    %368 = vmatpush1.msra.mxu0 0.0
    %369 = vmatprep.subr.mxu0 0.0
    %370 = vmatpush1.msra.mxu0 0.0
    %371 = vmatprep.subr.mxu0 0.0
    %372 = vmatpush1.msra.mxu0 0.0
    %373 = vmatprep.subr.mxu0 0.0
    %374 = vmatpush1.msra.mxu0 0.0
    %375 = vmatprep.subr.mxu0 0.0
    %376 = vmatpush1.msra.mxu0 0.0
    %377 = vmatprep.subr.mxu0 0.0
    %378 = vmatpush1.msra.mxu0 0.0
    %379 = vmatprep.subr.mxu0 0.0
    %380 = vmatpush1.msra.mxu0 0.0
    %381 = vmatprep.subr.mxu0 0.0
    %382 = vmatpush1.msra.mxu0 0.0
    %383 = vmatprep.subr.mxu0 0.0
    %384 = vmatpush1.msra.mxu0 0.0
    %385 = vmatprep.subr.mxu0 0.0
    %386 = vmatpush1.msra.mxu0 0.0
    %387 = vmatprep.subr.mxu0 0.0
    %388 = vmatpush1.msra.mxu0 0.0
    %389 = vmatprep.subr.mxu0 0.0
    %390 = vmatpush1.msra.mxu0 0.0
    %391 = vmatprep.subr.mxu0 0.0
    %392 = vmatpush1.msra.mxu0 0.0
    %393 = vmatprep.subr.mxu0 0.0
    %394 = vmatpush1.msra.mxu0 0.0
    %395 = vmatprep.subr.mxu0 0.0
    %396 = vmatpush1.msra.mxu0 0.0
    %397 = vmatprep.subr.mxu0 0.0
    %398 = vmatpush1.msra.mxu0 0.0
    %399 = vmatprep.subr.mxu0 0.0
    %400 = vmatpush1.msra.mxu0 0.0
    %401 = vmatprep.subr.mxu0 0.0
    %402 = vmatpush1.msra.mxu0 0.0
    %403 = vmatprep.subr.mxu0 0.0
    %404 = vmatpush1.msra.mxu0 0.0
    %405 = vmatprep.mubr.f32.mxu0 0.0
    %406 = vmatmul.mubr.f32.gmra.mrb[0].mxu0 %v294
    %v407 = vpop.f32.mrb[0].mxu0
    %v408 = vadd.f32 0.0, %v407
    %v409 = vpop.f32.mrb[0].mxu0
    %410 = vmatprep.mubr.f32.mxu0 0.0
    %411 = vmatmul.mubr.f32.gmra.mrb[0].mxu0 %v297
    %v412 = vpop.f32.mrb[0].mxu0
    %v413 = vadd.f32 0.0, %v412
    %v414 = vpop.f32.mrb[0].mxu0
    %415 = vmatprep.mubr.f32.mxu0 0.0
    %416 = vmatmul.mubr.f32.gmra.mrb[0].mxu0 %v300
    %v417 = vpop.f32.mrb[0].mxu0
    %v418 = vadd.f32 0.0, %v417
    %v419 = vpop.f32.mrb[0].mxu0
    %420 = vmatprep.mubr.f32.mxu0 0.0
    %421 = vmatmul.mubr.f32.gmra.mrb[0].mxu0 %v303
    %v422 = vpop.f32.mrb[0].mxu0
    %v423 = vadd.f32 0.0, %v422
    %v424 = vpop.f32.mrb[0].mxu0
    %425 = vmatprep.mubr.f32.mxu0 0.0
    %426 = vmatmul.mubr.f32.gmra.mrb[0].mxu0 %v306
    %v427 = vpop.f32.mrb[0].mxu0
    %v428 = vadd.f32 0.0, %v427
    %v429 = vpop.f32.mrb[0].mxu0
    %430 = vmatprep.mubr.f32.mxu0 0.0
    %431 = vmatmul.mubr.f32.gmra.mrb[0].mxu0 %v309
    %v432 = vpop.f32.mrb[0].mxu0
    %v433 = vadd.f32 0.0, %v432
    %v434 = vpop.f32.mrb[0].mxu0
    %435 = vmatprep.mubr.f32.mxu0 0.0
    %436 = vmatmul.mubr.f32.gmra.mrb[0].mxu0 %v312
    %v437 = vpop.f32.mrb[0].mxu0
    %v438 = vadd.f32 0.0, %v437
    %v439 = vpop.f32.mrb[0].mxu0
    %440 = vmatprep.mubr.f32.mxu0 0.0
    %441 = vmatmul.mubr.f32.gmra.mrb[0].mxu0 %v315
    %v442 = vpop.f32.mrb[0].mxu0
    %v443 = vadd.f32 0.0, %v442
    %v444 = vpop.f32.mrb[0].mxu0
    %445 = vmatprep.mubr.f32.mxu0 0.0
    %446 = vmatmul.mubr.f32.gmra.mrb[0].mxu0 %v318
    %v447 = vpop.f32.mrb[0].mxu0
    %v448 = vadd.f32 0.0, %v447
    %v449 = vpop.f32.mrb[0].mxu0
    %450 = vmatprep.mubr.f32.mxu0 0.0
    %451 = vmatmul.mubr.f32.gmra.mrb[0].mxu0 %v321
    %v452 = vpop.f32.mrb[0].mxu0
    %v453 = vadd.f32 0.0, %v452
    %v454 = vpop.f32.mrb[0].mxu0
    %455 = vmatprep.mubr.f32.mxu0 0.0
    %456 = vmatmul.mubr.f32.gmra.mrb[0].mxu0 %v324
    %v457 = vpop.f32.mrb[0].mxu0
    %v458 = vadd.f32 0.0, %v457
    %v459 = vpop.f32.mrb[0].mxu0
    %460 = vmatprep.mubr.f32.mxu0 0.0
    %461 = vmatmul.mubr.f32.gmra.mrb[0].mxu0 %v327
    %v462 = vpop.f32.mrb[0].mxu0
    %v463 = vadd.f32 0.0, %v462
    %v464 = vpop.f32.mrb[0].mxu0
    %465 = vmatprep.mubr.f32.mxu0 0.0
    %466 = vmatmul.mubr.f32.gmra.mrb[0].mxu0 %v330
    %v467 = vpop.f32.mrb[0].mxu0
    %v468 = vadd.f32 0.0, %v467
    %v469 = vpop.f32.mrb[0].mxu0
    %470 = vmatprep.mubr.f32.mxu0 0.0
    %471 = vmatmul.mubr.f32.gmra.mrb[0].mxu0 %v333
    %v472 = vpop.f32.mrb[0].mxu0
    %v473 = vadd.f32 0.0, %v472
    %v474 = vpop.f32.mrb[0].mxu0
    %475 = vmatprep.mubr.f32.mxu0 0.0
    %476 = vmatmul.mubr.f32.gmra.mrb[0].mxu0 %v336
    %v477 = vpop.f32.mrb[0].mxu0
    %v478 = vadd.f32 0.0, %v477
    %v479 = vpop.f32.mrb[0].mxu0
    %480 = vmatprep.mubr.f32.mxu0 0.0
    %481 = vmatmul.mubr.f32.gmra.mrb[0].mxu0 %v339
    %v482 = vpop.f32.mrb[0].mxu0
    %v483 = vadd.f32 0.0, %v482
    %v484 = vpop.f32.mrb[0].mxu0
    %485 = vdwg.mxu0
    %v487 = vcombine.high %v286, %v286
    %v489 = vunpack.c.l.s4 1966171168
    %v490 = vunpack.c.0.s8 %v489
    %v491 = vlaneseq
    %v492 = vshrl.u32 %v491, 7
    %v493 = vsub.s32 %v490, %v492
    %v494 = vrot.slane %v286, %v493
    %v496 = vunpack.c.l.s4 1966171168
    %v497 = vunpack.c.0.s8 %v496
    %v498 = vlaneseq
    %v499 = vshrl.u32 %v498, 7
    %v500 = vsub.s32 %v497, %v499
    %v501 = vrot.slane %v487, %v500
    %v502 = vcombine.high %v494, %v494
    %v503 = vcombine.high %v501, %v501
    %v505 = vunpack.c.l.s4 1966171168
    %v506 = vunpack.c.0.s8 %v505
    %v507 = vlaneseq
    %v508 = vshrl.u32 %v507, 7
    %v509 = vsub.s32 %v506, %v508
    %v510 = vrot.slane %v494, %v509
    %v512 = vunpack.c.l.s4 1966171168
    %v513 = vunpack.c.0.s8 %v512
    %v514 = vlaneseq
    %v515 = vshrl.u32 %v514, 7
    %v516 = vsub.s32 %v513, %v515
    %v517 = vrot.slane %v501, %v516
    %v519 = vunpack.c.l.s4 1966171168
    %v520 = vunpack.c.0.s8 %v519
    %v521 = vlaneseq
    %v522 = vshrl.u32 %v521, 7
    %v523 = vsub.s32 %v520, %v522
    %v524 = vrot.slane %v502, %v523
    %v526 = vunpack.c.l.s4 1966171168
    %v527 = vunpack.c.0.s8 %v526
    %v528 = vlaneseq
    %v529 = vshrl.u32 %v528, 7
    %v530 = vsub.s32 %v527, %v529
    %v531 = vrot.slane %v503, %v530
    %v532 = vcombine.high %v510, %v510
    %v533 = vcombine.high %v517, %v517
    %v534 = vcombine.high %v524, %v524
    %v535 = vcombine.high %v531, %v531
    %v536 = vlaneseq
    %v537 = vshrl.u32 %v536, 7
    %v538 = vsub.s32 0, %v537
    %v539 = vrot.slane %v510, %v538
    %v540 = vlaneseq
    %v541 = vshrl.u32 %v540, 7
    %v542 = vsub.s32 0, %v541
    %v543 = vrot.slane %v524, %v542
    %v544 = vlaneseq
    %v545 = vshrl.u32 %v544, 7
    %v546 = vsub.s32 0, %v545
    %v547 = vrot.slane %v532, %v546
    %v548 = vlaneseq
    %v549 = vshrl.u32 %v548, 7
    %v550 = vsub.s32 0, %v549
    %v551 = vrot.slane %v534, %v550
    %v552 = vlaneseq
    %v553 = vshrl.u32 %v552, 7
    %v554 = vsub.s32 0, %v553
    %v555 = vrot.slane %v517, %v554
    %v556 = vlaneseq
    %v557 = vshrl.u32 %v556, 7
    %v558 = vsub.s32 0, %v557
    %v559 = vrot.slane %v531, %v558
    %v560 = vlaneseq
    %v561 = vshrl.u32 %v560, 7
    %v562 = vsub.s32 0, %v561
    %v563 = vrot.slane %v533, %v562
    %v564 = vlaneseq
    %v565 = vshrl.u32 %v564, 7
    %v566 = vsub.s32 0, %v565
    %v567 = vrot.slane %v535, %v566
    %v576 = vadd.f32 %v408, %v539
    %v577 = vadd.f32 %v413, %v539
    %v578 = vadd.f32 %v418, %v543
    %v579 = vadd.f32 %v423, %v543
    %v580 = vadd.f32 %v428, %v547
    %v581 = vadd.f32 %v433, %v547
    %v582 = vadd.f32 %v438, %v551
    %v583 = vadd.f32 %v443, %v551
    %v584 = vadd.f32 %v448, %v555
    %v585 = vadd.f32 %v453, %v555
    %v586 = vadd.f32 %v458, %v559
    %v587 = vadd.f32 %v463, %v559
    %v588 = vadd.f32 %v468, %v563
    %v589 = vadd.f32 %v473, %v563
    %v590 = vadd.f32 %v478, %v567
    %v591 = vadd.f32 %v483, %v567
    %v592 = vtanh.pop %v576
    %v593 = vtanh.pop %v577
    %v594 = vtanh.pop %v578
    %v595 = vtanh.pop %v579
    %v596 = vtanh.pop %v580
    %v597 = vtanh.pop %v581
    %v598 = vtanh.pop %v582
    %v599 = vtanh.pop %v583
    %v600 = vtanh.pop %v584
    %v601 = vtanh.pop %v585
    %v602 = vtanh.pop %v586
    %v603 = vtanh.pop %v587
    %v604 = vtanh.pop %v588
    %v605 = vtanh.pop %v589
    %v606 = vtanh.pop %v590
    %v607 = vtanh.pop %v591
    %v608 = vld [vmem:[%s6] sm:$0x1]
    %v610 = vlaneseq
    %v611 = vshrl.u32 %v610, 7
    %v612 = vsub.s32 0, %v611
    %v613 = vrot.slane %v608, %v612
    %v615 = vmul.f32 %v592, %v613
    %v616 = vmul.f32 %v593, %v613
    %v617 = vmul.f32 %v594, %v613
    %v618 = vmul.f32 %v595, %v613
    %v619 = vmul.f32 %v596, %v613
    %v620 = vmul.f32 %v597, %v613
    %v621 = vmul.f32 %v598, %v613
    %v622 = vmul.f32 %v599, %v613
    %v623 = vmul.f32 %v600, %v613
    %v624 = vmul.f32 %v601, %v613
    %v625 = vmul.f32 %v602, %v613
    %v626 = vmul.f32 %v603, %v613
    %v627 = vmul.f32 %v604, %v613
    %v628 = vmul.f32 %v605, %v613
    %v629 = vmul.f32 %v606, %v613
    %v630 = vmul.f32 %v607, %v613
    %v631 = vsel %vm216, %v615, 0.0
    %632 = vadd.xlane.f32.xlu0 %v631
    %v633 = vpop.xlane.xlu0 %632
    %v634 = vsel %vm216, %v616, 0.0
    %635 = vadd.xlane.f32.xlu0 %v634
    %v636 = vpop.xlane.xlu0 %635
    %v637 = vsel %vm216, %v617, 0.0
    %638 = vadd.xlane.f32.xlu0 %v637
    %v639 = vpop.xlane.xlu0 %638
    %v640 = vsel %vm216, %v618, 0.0
    %641 = vadd.xlane.f32.xlu0 %v640
    %v642 = vpop.xlane.xlu0 %641
    %v643 = vsel %vm216, %v619, 0.0
    %644 = vadd.xlane.f32.xlu0 %v643
    %v645 = vpop.xlane.xlu0 %644
    %v646 = vsel %vm216, %v620, 0.0
    %647 = vadd.xlane.f32.xlu0 %v646
    %v648 = vpop.xlane.xlu0 %647
    %v649 = vsel %vm216, %v621, 0.0
    %650 = vadd.xlane.f32.xlu0 %v649
    %v651 = vpop.xlane.xlu0 %650
    %v652 = vsel %vm216, %v622, 0.0
    %653 = vadd.xlane.f32.xlu0 %v652
    %v654 = vpop.xlane.xlu0 %653
    %v655 = vsel %vm216, %v623, 0.0
    %656 = vadd.xlane.f32.xlu0 %v655
    %v657 = vpop.xlane.xlu0 %656
    %v658 = vsel %vm216, %v624, 0.0
    %659 = vadd.xlane.f32.xlu0 %v658
    %v660 = vpop.xlane.xlu0 %659
    %v661 = vsel %vm216, %v625, 0.0
    %662 = vadd.xlane.f32.xlu0 %v661
    %v663 = vpop.xlane.xlu0 %662
    %v664 = vsel %vm216, %v626, 0.0
    %665 = vadd.xlane.f32.xlu0 %v664
    %v666 = vpop.xlane.xlu0 %665
    %v667 = vsel %vm216, %v627, 0.0
    %668 = vadd.xlane.f32.xlu0 %v667
    %v669 = vpop.xlane.xlu0 %668
    %v670 = vsel %vm216, %v628, 0.0
    %671 = vadd.xlane.f32.xlu0 %v670
    %v672 = vpop.xlane.xlu0 %671
    %v673 = vsel %vm216, %v629, 0.0
    %674 = vadd.xlane.f32.xlu0 %v673
    %v675 = vpop.xlane.xlu0 %674
    %v676 = vsel %vm216, %v630, 0.0
    %677 = vadd.xlane.f32.xlu0 %v676
    %v678 = vpop.xlane.xlu0 %677
    %vm679 = vcmp.ne.s32.totalorder %v109, 0
    %v696 = vlaneseq
    %v697 = vand.u32 %v696, 127
    %v698 = vlaneseq
    %v699 = vshrl.u32 %v698, 7
    %v700 = vsub.s32 %v697, %v699
    %v701 = vrot.slane %v633, %v700
    %v702 = vadd.s32 %v697, 4294967288
    %v703 = vlaneseq
    %v704 = vshrl.u32 %v703, 7
    %v705 = vsub.s32 %v702, %v704
    %v706 = vrot.slane %v636, %v705
    %vm707 = vcmask 130112
    %v708 = vsel %vm707, %v706, %v701
    %v709 = vlaneseq
    %v710 = vshrl.u32 %v709, 7
    %v711 = vsub.s32 %v697, %v710
    %v712 = vrot.slane %v639, %v711
    %v713 = vlaneseq
    %v714 = vshrl.u32 %v713, 7
    %v715 = vsub.s32 %v702, %v714
    %v716 = vrot.slane %v642, %v715
    %v717 = vsel %vm707, %v716, %v712
    %v718 = vlaneseq
    %v719 = vshrl.u32 %v718, 7
    %v720 = vsub.s32 %v697, %v719
    %v721 = vrot.slane %v645, %v720
    %v722 = vlaneseq
    %v723 = vshrl.u32 %v722, 7
    %v724 = vsub.s32 %v702, %v723
    %v725 = vrot.slane %v648, %v724
    %v726 = vsel %vm707, %v725, %v721
    %v727 = vlaneseq
    %v728 = vshrl.u32 %v727, 7
    %v729 = vsub.s32 %v697, %v728
    %v730 = vrot.slane %v651, %v729
    %v731 = vlaneseq
    %v732 = vshrl.u32 %v731, 7
    %v733 = vsub.s32 %v702, %v732
    %v734 = vrot.slane %v654, %v733
    %v735 = vsel %vm707, %v734, %v730
    %v736 = vlaneseq
    %v737 = vshrl.u32 %v736, 7
    %v738 = vsub.s32 %v697, %v737
    %v739 = vrot.slane %v657, %v738
    %v740 = vlaneseq
    %v741 = vshrl.u32 %v740, 7
    %v742 = vsub.s32 %v702, %v741
    %v743 = vrot.slane %v660, %v742
    %v744 = vsel %vm707, %v743, %v739
    %v745 = vlaneseq
    %v746 = vshrl.u32 %v745, 7
    %v747 = vsub.s32 %v697, %v746
    %v748 = vrot.slane %v663, %v747
    %v749 = vlaneseq
    %v750 = vshrl.u32 %v749, 7
    %v751 = vsub.s32 %v702, %v750
    %v752 = vrot.slane %v666, %v751
    %v753 = vsel %vm707, %v752, %v748
    %v754 = vlaneseq
    %v755 = vshrl.u32 %v754, 7
    %v756 = vsub.s32 %v697, %v755
    %v757 = vrot.slane %v669, %v756
    %v758 = vlaneseq
    %v759 = vshrl.u32 %v758, 7
    %v760 = vsub.s32 %v702, %v759
    %v761 = vrot.slane %v672, %v760
    %v762 = vsel %vm707, %v761, %v757
    %v763 = vlaneseq
    %v764 = vshrl.u32 %v763, 7
    %v765 = vsub.s32 %v697, %v764
    %v766 = vrot.slane %v675, %v765
    %v767 = vlaneseq
    %v768 = vshrl.u32 %v767, 7
    %v769 = vsub.s32 %v702, %v768
    %v770 = vrot.slane %v678, %v769
    %v771 = vsel %vm707, %v770, %v766
    %v772 = vsel %vm202, %v717, %v708
    %v773 = vsel %vm204, %v726, %v772
    %v774 = vsel %vm206, %v735, %v773
    %v775 = vsel %vm208, %v744, %v774
    %v776 = vsel %vm210, %v753, %v775
    %v777 = vsel %vm212, %v762, %v776
    %v778 = vsel %vm214, %v771, %v777
    %v780 = vsel %vm679, %v778, -1e+20
    %vm781 = vcmask 130048
    %v782 = vsel %vm781, %v780, -inf
    %783 = vmax.xlane.f32.xlu0 %v782
    %v784 = vpop.xlane.xlu0 %783
    %v785 = vsub.f32 %v780, %v784
    %v786 = vmul.f32 %v785, 1.442695
    %v787 = vpow.pop %v786
    %v788 = vsel %vm781, %v787, 0.0
    %789 = vadd.xlane.f32.xlu0 %v788
    %v790 = vpop.xlane.xlu0 %789
    %v791 = vrcp.pop %v790
    %v792 = vmul.f32 %v787, %v791
    %v793 = vlaneseq
    %v794 = vshrl.u32 %v793, 7
    %v795 = vsub.s32 0, %v794
    %v796 = vrot.slane %v792, %v795
    %798 = vbcast.lane.b32.xlu0 %v796, 256
    %v799 = vpop.permute.xlu0 %798
    %s801 = sor.u32 256, 8
    %802 = vbcast.lane.b32.xlu0 %v796, %s801
    %v803 = vpop.permute.xlu0 %802
    %v804 = vlaneseq
    %v805 = vshrl.u32 %v804, 7
    %v806 = vsub.s32 1, %v805
    %v807 = vrot.slane %v792, %v806
    %809 = vbcast.lane.b32.xlu0 %v807, 256
    %v810 = vpop.permute.xlu0 %809
    %s812 = sor.u32 256, 8
    %813 = vbcast.lane.b32.xlu0 %v807, %s812
    %v814 = vpop.permute.xlu0 %813
    %v815 = vlaneseq
    %v816 = vshrl.u32 %v815, 7
    %v817 = vsub.s32 2, %v816
    %v818 = vrot.slane %v792, %v817
    %820 = vbcast.lane.b32.xlu0 %v818, 256
    %v821 = vpop.permute.xlu0 %820
    %s823 = sor.u32 256, 8
    %824 = vbcast.lane.b32.xlu0 %v818, %s823
    %v825 = vpop.permute.xlu0 %824
    %v826 = vlaneseq
    %v827 = vshrl.u32 %v826, 7
    %v828 = vsub.s32 3, %v827
    %v829 = vrot.slane %v792, %v828
    %831 = vbcast.lane.b32.xlu0 %v829, 256
    %v832 = vpop.permute.xlu0 %831
    %s834 = sor.u32 256, 8
    %835 = vbcast.lane.b32.xlu0 %v829, %s834
    %v836 = vpop.permute.xlu0 %835
    %v837 = vlaneseq
    %v838 = vshrl.u32 %v837, 7
    %v839 = vsub.s32 4, %v838
    %v840 = vrot.slane %v792, %v839
    %842 = vbcast.lane.b32.xlu0 %v840, 256
    %v843 = vpop.permute.xlu0 %842
    %s845 = sor.u32 256, 8
    %846 = vbcast.lane.b32.xlu0 %v840, %s845
    %v847 = vpop.permute.xlu0 %846
    %v848 = vlaneseq
    %v849 = vshrl.u32 %v848, 7
    %v850 = vsub.s32 5, %v849
    %v851 = vrot.slane %v792, %v850
    %853 = vbcast.lane.b32.xlu0 %v851, 256
    %v854 = vpop.permute.xlu0 %853
    %s856 = sor.u32 256, 8
    %857 = vbcast.lane.b32.xlu0 %v851, %s856
    %v858 = vpop.permute.xlu0 %857
    %v859 = vlaneseq
    %v860 = vshrl.u32 %v859, 7
    %v861 = vsub.s32 6, %v860
    %v862 = vrot.slane %v792, %v861
    %864 = vbcast.lane.b32.xlu0 %v862, 256
    %v865 = vpop.permute.xlu0 %864
    %s867 = sor.u32 256, 8
    %868 = vbcast.lane.b32.xlu0 %v862, %s867
    %v869 = vpop.permute.xlu0 %868
    %v870 = vlaneseq
    %v871 = vshrl.u32 %v870, 7
    %v872 = vsub.s32 7, %v871
    %v873 = vrot.slane %v792, %v872
    %875 = vbcast.lane.b32.xlu0 %v873, 256
    %v876 = vpop.permute.xlu0 %875
    %s878 = sor.u32 256, 8
    %879 = vbcast.lane.b32.xlu0 %v873, %s878
    %v880 = vpop.permute.xlu0 %879
    %v881 = vmul.f32 %v799, %v93
    %v882 = vmul.f32 %v803, %v94
    %v883 = vmul.f32 %v810, %v95
    %v884 = vmul.f32 %v814, %v96
    %v885 = vmul.f32 %v821, %v97
    %v886 = vmul.f32 %v825, %v98
    %v887 = vmul.f32 %v832, %v99
    %v888 = vmul.f32 %v836, %v100
    %v889 = vmul.f32 %v843, %v101
    %v890 = vmul.f32 %v847, %v102
    %v891 = vmul.f32 %v854, %v103
    %v892 = vmul.f32 %v858, %v104
    %v893 = vmul.f32 %v865, %v105
    %v894 = vmul.f32 %v869, %v106
    %v895 = vmul.f32 %v876, %v107
    %v896 = vmul.f32 %v880, %v108
    %v897 = vsel %vm216, %v881, 0.0
    %v898 = vsel %vm216, %v882, 0.0
    %v899 = vadd.f32 %v897, %v898
    %v900 = vrot.slane %v899, 4
    %v901 = vadd.f32 %v899, %v900
    %v902 = vrot.slane %v901, 2
    %v903 = vadd.f32 %v901, %v902
    %v904 = vrot.slane %v903, 1
    %v905 = vadd.f32 %v903, %v904
    %v906 = vsel %vm216, %v883, 0.0
    %v907 = vsel %vm216, %v884, 0.0
    %v908 = vadd.f32 %v906, %v907
    %v909 = vrot.slane %v908, 4
    %v910 = vadd.f32 %v908, %v909
    %v911 = vrot.slane %v910, 2
    %v912 = vadd.f32 %v910, %v911
    %v913 = vrot.slane %v912, 1
    %v914 = vadd.f32 %v912, %v913
    %v915 = vsel %vm216, %v885, 0.0
    %v916 = vsel %vm216, %v886, 0.0
    %v917 = vadd.f32 %v915, %v916
    %v918 = vrot.slane %v917, 4
    %v919 = vadd.f32 %v917, %v918
    %v920 = vrot.slane %v919, 2
    %v921 = vadd.f32 %v919, %v920
    %v922 = vrot.slane %v921, 1
    %v923 = vadd.f32 %v921, %v922
    %v924 = vsel %vm216, %v887, 0.0
    %v925 = vsel %vm216, %v888, 0.0
    %v926 = vadd.f32 %v924, %v925
    %v927 = vrot.slane %v926, 4
    %v928 = vadd.f32 %v926, %v927
    %v929 = vrot.slane %v928, 2
    %v930 = vadd.f32 %v928, %v929
    %v931 = vrot.slane %v930, 1
    %v932 = vadd.f32 %v930, %v931
    %v933 = vsel %vm216, %v889, 0.0
    %v934 = vsel %vm216, %v890, 0.0
    %v935 = vadd.f32 %v933, %v934
    %v936 = vrot.slane %v935, 4
    %v937 = vadd.f32 %v935, %v936
    %v938 = vrot.slane %v937, 2
    %v939 = vadd.f32 %v937, %v938
    %v940 = vrot.slane %v939, 1
    %v941 = vadd.f32 %v939, %v940
    %v942 = vsel %vm216, %v891, 0.0
    %v943 = vsel %vm216, %v892, 0.0
    %v944 = vadd.f32 %v942, %v943
    %v945 = vrot.slane %v944, 4
    %v946 = vadd.f32 %v944, %v945
    %v947 = vrot.slane %v946, 2
    %v948 = vadd.f32 %v946, %v947
    %v949 = vrot.slane %v948, 1
    %v950 = vadd.f32 %v948, %v949
    %v951 = vsel %vm216, %v893, 0.0
    %v952 = vsel %vm216, %v894, 0.0
    %v953 = vadd.f32 %v951, %v952
    %v954 = vrot.slane %v953, 4
    %v955 = vadd.f32 %v953, %v954
    %v956 = vrot.slane %v955, 2
    %v957 = vadd.f32 %v955, %v956
    %v958 = vrot.slane %v957, 1
    %v959 = vadd.f32 %v957, %v958
    %v960 = vsel %vm216, %v895, 0.0
    %v961 = vsel %vm216, %v896, 0.0
    %v962 = vadd.f32 %v960, %v961
    %v963 = vrot.slane %v962, 4
    %v964 = vadd.f32 %v962, %v963
    %v965 = vrot.slane %v964, 2
    %v966 = vadd.f32 %v964, %v965
    %v967 = vrot.slane %v966, 1
    %v968 = vadd.f32 %v966, %v967
    %v977 = vsel %vm202, %v914, %v905
    %v978 = vsel %vm204, %v923, %v977
    %v979 = vsel %vm206, %v932, %v978
    %v980 = vsel %vm208, %v941, %v979
    %v981 = vsel %vm210, %v950, %v980
    %v982 = vsel %vm212, %v959, %v981
    %v983 = vsel %vm214, %v968, %v982
    %985 = vst.msk [vmem:[#allocation11] sm:$0xff] %vm216, %v983
    // Predicated region
    $region50: #{tpu_custom_call.1} parent=1 // pred_check
      _
    $region51: #{tpu_custom_call.1} parent=1 // pred_check_branch
      %987 = sbr.rel (0) target = $region53
    $region52: #{tpu_custom_call.1} parent=1 // pred_region
      %s989 = ssub.s32 128, 128
      %990 = vsyncadd [#allocation4], %s989
      %s992 = sshll.u32 [#allocation11], 4
      %s993 = int_to_ptr.vmem [resolvable:$true] %s992
      %995 = dma.vmem_to_hbm [thread:$0]  %s993, 128, %s7, [#allocation4]
    $region53: #{tpu_custom_call.1} parent=1 // pred_fallthru
      _
    // Predicated region
    $region54: #{tpu_custom_call.1} parent=1 // pred_check
      _
    $region55: #{tpu_custom_call.1} parent=1 // pred_check_branch
      %997 = sbr.rel (0) target = $region57
    $region56: #{tpu_custom_call.1} parent=1 // pred_region
      %998 = dma.done [#allocation4], 128
    $region57: #{tpu_custom_call.1} parent=1 // pred_fallthru
      _
    %999 = vsyncpa [#allocation3], 1
    %1000 = vsyncpa [#allocation6], 1
    %1001 = vsyncpa [#allocation9], 1
    %1002 = vsyncpa [#allocation4], 1

</llo_original>
